<compile_context>
chip_gen: v7x
topology: tpu7x:2x2x1
jax: 0.10.0
libtpu: 0.0.40
codegen_flags: <defaults>
</compile_context>

<pallas_src>
import jax
import jax.numpy as jnp
import numpy as np
from jax import lax
from jax.experimental import pallas as pl
from jax.experimental.pallas import tpu as pltpu

SMOOTH = 1e-10
W_JACCARD = 0.9
W_DIST = 0.1
MAX_SAMPLES = 100   # self.max_samples in the PyTorch module
PTS_PAD = 128       # point capacity padded to a full lane dimension
SLAB_ROWS = 8       # coords (<=6) + squared-norm row + ones row, padded to 8
LANES = 128


def _round_up(x, m):
    return ((x + m - 1) // m) * m


# --------------------------- fused loss kernel ----------------------------- #
def _make_kernel(tile_rows, n_valid, needs_mask):
    """Builds the fused Jaccard + chamfer kernel (statically specialized)."""

    def kernel(counts_ref, p_ref, t_ref, a_ref, b_ref, out_ref,
               acc_sum, acc_prod):
        i = pl.program_id(0)

        @pl.when(i == 0)
        def _init():
            acc_sum[...] = jnp.zeros_like(acc_sum)
            acc_prod[...] = jnp.zeros_like(acc_prod)

        p = jax.nn.sigmoid(p_ref[...].astype(jnp.float32))
        t = t_ref[...].astype(jnp.float32)

        if needs_mask:  # static: only emitted when the grid overhangs the data
            row_ids = lax.broadcasted_iota(jnp.int32, (tile_rows, LANES), 0)
            lane_ids = lax.broadcasted_iota(jnp.int32, (tile_rows, LANES), 1)
            flat = (i * tile_rows + row_ids) * LANES + lane_ids
            valid = flat < n_valid
            p = jnp.where(valid, p, 0.0)
            t = jnp.where(valid, t, 0.0)

        # Two lane-wide partial sums instead of three full-tile accumulators.
        acc_sum[...] += jnp.sum(p + t, axis=0, keepdims=True)
        acc_prod[...] += jnp.sum(p * t, axis=0, keepdims=True)

        @pl.when(i == pl.num_programs(0) - 1)
        def _finish():
            # --- Jaccard ---
            inter = jnp.sum(acc_prod[...])
            union = jnp.sum(acc_sum[...]) - inter
            jl = 1.0 - (inter + SMOOTH) / (union + SMOOTH)

            # --- chamfer distance on the sampled positive points ---
            n_p = counts_ref[0]   # valid pred points
            n_l = counts_ref[1]   # valid label points

            # Single MXU matmul gives all pairwise squared distances.
            d2 = jnp.dot(a_ref[...], b_ref[...],
                         preferred_element_type=jnp.float32)   # (P, L)
            d = jnp.sqrt(jnp.maximum(d2, 0.0))

            P, L = d.shape
            big = jnp.float32(1e30)
            col_ids = lax.broadcasted_iota(jnp.int32, (P, L), 1)
            row_ids = lax.broadcasted_iota(jnp.int32, (P, L), 0)

            # pred -> label: min over valid label cols, mean over valid pred rows
            min_pl = jnp.min(jnp.where(col_ids < n_l, d, big),
                             axis=1, keepdims=True)                 # (P, 1)
            rvalid = lax.broadcasted_iota(jnp.int32, (P, 1), 0) < n_p
            mean_pl = jnp.sum(jnp.where(rvalid, min_pl, 0.0)) / jnp.maximum(
                n_p.astype(jnp.float32), 1.0)

            # label -> pred: min over valid pred rows, mean over valid label cols
            min_lp = jnp.min(jnp.where(row_ids < n_p, d, big),
                             axis=0, keepdims=True)                 # (1, L)
            cvalid = lax.broadcasted_iota(jnp.int32, (1, L), 1) < n_l
            mean_lp = jnp.sum(jnp.where(cvalid, min_lp, 0.0)) / jnp.maximum(
                n_l.astype(jnp.float32), 1.0)

            chamfer = mean_pl + mean_lp
            dist = jnp.where(
                n_l == 0, n_p.astype(jnp.float32),
                jnp.where(n_p == 0, n_l.astype(jnp.float32), chamfer))

            out_ref[...] = jnp.full((1, 1), W_JACCARD * jl + W_DIST * dist,
                                    dtype=jnp.float32)

    return kernel


# ------------------------------ point slabs -------------------------------- #
def _point_features(x):
    """(ndim, 128) coords, (1, 128) squared norms, (1, 128) ones, valid count."""
    mask = (x > 0.5).reshape(-1)
    count = jnp.minimum(jnp.sum(mask.astype(jnp.int32)), MAX_SAMPLES)
    # TODO(synk): PyTorch samples MAX_SAMPLES points via torch.randperm; here we
    # deterministically keep the first MAX_SAMPLES positives (row-major order).
    (idx,) = jnp.nonzero(mask, size=MAX_SAMPLES, fill_value=0)
    coords = jnp.stack(jnp.unravel_index(idx, x.shape), axis=0).astype(jnp.float32)
    ndim = coords.shape[0]
    c = jnp.zeros((ndim, PTS_PAD), jnp.float32).at[:, :MAX_SAMPLES].set(coords)
    sq = jnp.sum(c * c, axis=0, keepdims=True)
    one = jnp.ones((1, PTS_PAD), jnp.float32)
    return c, sq, one, count


def _pred_slab(x):
    """(128, 8) LHS slab: columns [coords, ||c||^2, 1, 0...]."""
    c, sq, one, count = _point_features(x)
    pad = jnp.zeros((SLAB_ROWS - c.shape[0] - 2, PTS_PAD), jnp.float32)
    return jnp.concatenate([c, sq, one, pad], axis=0).T, count


def _label_slab(x):
    """(8, 128) lane-dense RHS slab: rows [-2*coords, 1, ||c||^2, 0...]."""
    c, sq, one, count = _point_features(x)
    pad = jnp.zeros((SLAB_ROWS - c.shape[0] - 2, PTS_PAD), jnp.float32)
    return jnp.concatenate([-2.0 * c, one, sq, pad], axis=0), count


# ------------------------------ entry point -------------------------------- #
def distance_count_loss(y_pred, y_true, *, tile_rows_max=2048):
    assert y_pred.shape == y_true.shape
    assert y_pred.ndim <= SLAB_ROWS - 2, "coordinate rank too large for slab"
    assert tile_rows_max % 8 == 0

    n = y_pred.size
    rows = pl.cdiv(n, LANES)
    padded = rows * LANES

    p_flat = y_pred.reshape(-1).astype(jnp.float32)
    t_flat = y_true.reshape(-1).astype(jnp.float32)
    if padded != n:
        # Only needed when the element count is not a multiple of 128; the
        # (arbitrary) pad values are masked inside the kernel.
        p_flat = jnp.pad(p_flat, (0, padded - n))
        t_flat = jnp.pad(t_flat, (0, padded - n))
    p2 = p_flat.reshape(rows, LANES)
    t2 = t_flat.reshape(rows, LANES)

    tile_rows = min(tile_rows_max, _round_up(rows, 8))
    grid = pl.cdiv(rows, tile_rows)
    covered = grid * tile_rows * LANES
    needs_mask = covered != n           # static: mask only when tiles overhang

    pred_slab, n_pred = _pred_slab(y_pred)
    label_slab, n_label = _label_slab(y_true)
    counts = jnp.stack([n_pred, n_label]).astype(jnp.int32)

    cost = pl.CostEstimate(
        flops=6 * covered + 2 * PTS_PAD * PTS_PAD * SLAB_ROWS,
        transcendentals=covered,
        bytes_accessed=2 * covered * 4 + 2 * SLAB_ROWS * PTS_PAD * 4 + 4)

    out = pl.pallas_call(
        _make_kernel(tile_rows, n, needs_mask),
        out_shape=jax.ShapeDtypeStruct((1, 1), jnp.float32),
        grid_spec=pltpu.PrefetchScalarGridSpec(
            num_scalar_prefetch=1,
            grid=(grid,),
            in_specs=[
                pl.BlockSpec((tile_rows, LANES), lambda i, c: (i, 0)),
                pl.BlockSpec((tile_rows, LANES), lambda i, c: (i, 0)),
                pl.BlockSpec((PTS_PAD, SLAB_ROWS), lambda i, c: (0, 0)),
                pl.BlockSpec((SLAB_ROWS, PTS_PAD), lambda i, c: (0, 0)),
            ],
            out_specs=pl.BlockSpec((1, 1), lambda i, c: (0, 0)),
            scratch_shapes=[pltpu.VMEM((1, LANES), jnp.float32),
                            pltpu.VMEM((1, LANES), jnp.float32)]),
        compiler_params=pltpu.CompilerParams(
            dimension_semantics=("arbitrary",)),
        cost_estimate=cost,
    )(counts, p2, t2, pred_slab, label_slab)
    return out[0, 0]


# ----------------------------- Reference (numpy) --------------------------- #
def _ref_loss(y_pred, y_true):
    p = 1.0 / (1.0 + np.exp(-y_pred.reshape(-1).astype(np.float64)))
    t = y_true.reshape(-1).astype(np.float64)
    inter = (p * t).sum()
    union = p.sum() + t.sum() - inter
    jl = 1.0 - (inter + SMOOTH) / (union + SMOOTH)

    def pts(x):
        idx = np.argwhere(x > 0.5).astype(np.float64)
        return idx[:MAX_SAMPLES]

    a, b = pts(y_pred), pts(y_true)
    if b.shape[0] == 0:
        dist = float(a.shape[0])
    elif a.shape[0] == 0:
        dist = float(b.shape[0])
    else:
        d = np.sqrt(((a[:, None, :] - b[None, :, :]) ** 2).sum(-1))
        dist = d.min(1).mean() + d.min(0).mean()
    return W_JACCARD * jl + W_DIST * dist


if __name__ == "__main__":
    key = jax.random.PRNGKey(0)
    k1, k2 = jax.random.split(key)
    B, C, H, W = 2, 4, 16, 16
    y_pred = jax.random.normal(k1, (B, C, H, W), dtype=jnp.float32)
    y_true = (jax.random.uniform(k2, (B, C, H, W)) < 0.3).astype(jnp.float32)

    loss = jax.jit(distance_count_loss)(y_pred, y_true)
    loss = jax.block_until_ready(loss)

    ref = _ref_loss(np.asarray(y_pred), np.asarray(y_true))
    assert np.allclose(float(loss), ref, rtol=1e-4, atol=1e-4), (float(loss), ref)
    print("KERNEL_OK")
</pallas_src>

<mosaic_0001>
module attributes {stable_mosaic.version = 11 : i64} {
  func.func private @main(%arg0: i32) attributes {dimension_semantics = [#tpu.dimension_semantics<core_parallel>], iteration_bounds = array<i64: 2>, tpu.core_type = #tpu.core_type<sc_scalar_subcore>, window_params = []} {
    return
  }
}

module attributes {stable_mosaic.version = 11 : i64} {
  func.func private @main(%arg0: i32) attributes {dimension_semantics = [#tpu.dimension_semantics<core_parallel>], iteration_bounds = array<i64: 2>, tpu.core_type = #tpu.core_type<sc_scalar_subcore>, window_params = []} {
    return
  }
}

module attributes {stable_mosaic.version = 11 : i64} {
  func.func @kernel(%arg0: i32, %arg1: memref<2xi32, #tpu.memory_space<smem>>, %arg2: memref<16x128xf32, #tpu.memory_space<vmem>>, %arg3: memref<16x128xf32, #tpu.memory_space<vmem>>, %arg4: memref<128x8xf32, #tpu.memory_space<vmem>>, %arg5: memref<8x128xf32, #tpu.memory_space<vmem>>, %arg6: memref<1x1xf32, #tpu.memory_space<vmem>>, %arg7: memref<1x128xf32, #tpu.memory_space<vmem>>, %arg8: memref<1x128xf32, #tpu.memory_space<vmem>>) attributes {dimension_semantics = [#tpu.dimension_semantics<arbitrary>], iteration_bounds = array<i64: 1>, scalar_prefetch = 1 : i64, scratch_operands = 2 : i64, tpu.core_type = #tpu.core_type<tc>, window_params = [{transform_indices = @transform_0, window_bounds = array<i64: 16, 128>}, {transform_indices = @transform_1, window_bounds = array<i64: 16, 128>}, {pipeline_mode = #tpu.pipeline_mode<synchronous>, transform_indices = @transform_2, window_bounds = array<i64: 128, 8>}, {pipeline_mode = #tpu.pipeline_mode<synchronous>, transform_indices = @transform_3, window_bounds = array<i64: 8, 128>}, {pipeline_mode = #tpu.pipeline_mode<synchronous>, transform_indices = @transform_4, window_bounds = array<i64: 1, 1>}]} {
    %c0_i32 = arith.constant 0 : i32
    %0 = arith.cmpi eq, %arg0, %c0_i32 : i32
    %1 = arith.extui %0 : i1 to i32
    %c0_i32_0 = arith.constant 0 : i32
    %2 = arith.cmpi ne, %1, %c0_i32_0 : i32
    scf.if %2 {
      %cst_16 = arith.constant 0.000000e+00 : f32
      %25 = vector.broadcast %cst_16 : f32 to vector<1x128xf32>
      %c0_17 = arith.constant 0 : index
      %c0_18 = arith.constant 0 : index
      %26 = vector.load %arg7[%c0_17, %c0_18] : memref<1x128xf32, #tpu.memory_space<vmem>>, vector<1x128xf32>
      tpu.vector_store %arg7[%c0_17, %c0_18], %25 {strides = array<i32>} : memref<1x128xf32, #tpu.memory_space<vmem>>, vector<1x128xf32>,
      %cst_19 = arith.constant 0.000000e+00 : f32
      %27 = vector.broadcast %cst_19 : f32 to vector<1x128xf32>
      %c0_20 = arith.constant 0 : index
      %c0_21 = arith.constant 0 : index
      %28 = vector.load %arg8[%c0_20, %c0_21] : memref<1x128xf32, #tpu.memory_space<vmem>>, vector<1x128xf32>
      tpu.vector_store %arg8[%c0_20, %c0_21], %27 {strides = array<i32>} : memref<1x128xf32, #tpu.memory_space<vmem>>, vector<1x128xf32>,
    } else {
    }
    %c0 = arith.constant 0 : index
    %c0_1 = arith.constant 0 : index
    %3 = vector.load %arg2[%c0, %c0_1] : memref<16x128xf32, #tpu.memory_space<vmem>>, vector<16x128xf32>
    %4 = arith.negf %3 : vector<16x128xf32>
    %5 = math.exp %4 : vector<16x128xf32>
    %cst = arith.constant 1.000000e+00 : f32
    %6 = vector.broadcast %cst : f32 to vector<16x128xf32>
    %7 = arith.addf %6, %5 : vector<16x128xf32>
    %8 = arith.divf %6, %7 : vector<16x128xf32>
    %c0_2 = arith.constant 0 : index
    %c0_3 = arith.constant 0 : index
    %9 = vector.load %arg3[%c0_2, %c0_3] : memref<16x128xf32, #tpu.memory_space<vmem>>, vector<16x128xf32>
    %c0_4 = arith.constant 0 : index
    %c0_5 = arith.constant 0 : index
    %10 = vector.load %arg7[%c0_4, %c0_5] : memref<1x128xf32, #tpu.memory_space<vmem>>, vector<1x128xf32>
    %11 = arith.addf %8, %9 : vector<16x128xf32>
    %cst_6 = arith.constant dense<0.000000e+00> : vector<128xf32>
    %12 = vector.multi_reduction <add>, %11, %cst_6 [0] : vector<16x128xf32> to vector<128xf32>
    %13 = vector.shape_cast %12 : vector<128xf32> to vector<1x128xf32>
    %14 = arith.addf %10, %13 : vector<1x128xf32>
    %c0_7 = arith.constant 0 : index
    %c0_8 = arith.constant 0 : index
    %15 = vector.load %arg7[%c0_7, %c0_8] : memref<1x128xf32, #tpu.memory_space<vmem>>, vector<1x128xf32>
    tpu.vector_store %arg7[%c0_7, %c0_8], %14 {strides = array<i32>} : memref<1x128xf32, #tpu.memory_space<vmem>>, vector<1x128xf32>,
    %c0_9 = arith.constant 0 : index
    %c0_10 = arith.constant 0 : index
    %16 = vector.load %arg8[%c0_9, %c0_10] : memref<1x128xf32, #tpu.memory_space<vmem>>, vector<1x128xf32>
    %17 = arith.mulf %8, %9 : vector<16x128xf32>
    %cst_11 = arith.constant dense<0.000000e+00> : vector<128xf32>
    %18 = vector.multi_reduction <add>, %17, %cst_11 [0] : vector<16x128xf32> to vector<128xf32>
    %19 = vector.shape_cast %18 : vector<128xf32> to vector<1x128xf32>
    %20 = arith.addf %16, %19 : vector<1x128xf32>
    %c0_12 = arith.constant 0 : index
    %c0_13 = arith.constant 0 : index
    %21 = vector.load %arg8[%c0_12, %c0_13] : memref<1x128xf32, #tpu.memory_space<vmem>>, vector<1x128xf32>
    tpu.vector_store %arg8[%c0_12, %c0_13], %20 {strides = array<i32>} : memref<1x128xf32, #tpu.memory_space<vmem>>, vector<1x128xf32>,
    %c0_i32_14 = arith.constant 0 : i32
    %22 = arith.cmpi eq, %arg0, %c0_i32_14 : i32
    %23 = arith.extui %22 : i1 to i32
    %c0_i32_15 = arith.constant 0 : i32
    %24 = arith.cmpi ne, %23, %c0_i32_15 : i32
    scf.if %24 {
      %c0_16 = arith.constant 0 : index
      %c0_17 = arith.constant 0 : index
      %25 = vector.load %arg8[%c0_16, %c0_17] : memref<1x128xf32, #tpu.memory_space<vmem>>, vector<1x128xf32>
      %26 = vector.shape_cast %25 : vector<1x128xf32> to vector<1x1x128xf32>
      %cst_18 = arith.constant dense<0.000000e+00> : vector<1xf32>
      %27 = vector.multi_reduction <add>, %26, %cst_18 [1, 2] : vector<1x1x128xf32> to vector<1xf32>
      %28 = vector.shape_cast %27 : vector<1xf32> to vector<1x1x1xf32>
      %29 = vector.extract %28[0, 0, 0] : f32 from vector<1x1x1xf32>
      %c0_19 = arith.constant 0 : index
      %c0_20 = arith.constant 0 : index
      %30 = vector.load %arg7[%c0_19, %c0_20] : memref<1x128xf32, #tpu.memory_space<vmem>>, vector<1x128xf32>
      %31 = vector.shape_cast %30 : vector<1x128xf32> to vector<1x1x128xf32>
      %cst_21 = arith.constant dense<0.000000e+00> : vector<1xf32>
      %32 = vector.multi_reduction <add>, %31, %cst_21 [1, 2] : vector<1x1x128xf32> to vector<1xf32>
      %33 = vector.shape_cast %32 : vector<1xf32> to vector<1x1x1xf32>
      %34 = vector.extract %33[0, 0, 0] : f32 from vector<1x1x1xf32>
      %35 = arith.subf %34, %29 : f32
      %cst_22 = arith.constant 1.000000e-10 : f32
      %36 = arith.addf %29, %cst_22 : f32
      %cst_23 = arith.constant 1.000000e-10 : f32
      %37 = arith.addf %35, %cst_23 : f32
      %38 = arith.divf %36, %37 : f32
      %cst_24 = arith.constant 1.000000e+00 : f32
      %39 = arith.subf %cst_24, %38 : f32
      %c0_25 = arith.constant 0 : index
      %40 = memref.load %arg1[%c0_25] : memref<2xi32, #tpu.memory_space<smem>>
      %c1 = arith.constant 1 : index
      %41 = memref.load %arg1[%c1] : memref<2xi32, #tpu.memory_space<smem>>
      %c0_26 = arith.constant 0 : index
      %c0_27 = arith.constant 0 : index
      %42 = vector.load %arg4[%c0_26, %c0_27] : memref<128x8xf32, #tpu.memory_space<vmem>>, vector<128x8xf32>
      %c0_28 = arith.constant 0 : index
      %c0_29 = arith.constant 0 : index
      %43 = vector.load %arg5[%c0_28, %c0_29] : memref<8x128xf32, #tpu.memory_space<vmem>>, vector<8x128xf32>
      %cst_30 = arith.constant dense<0.000000e+00> : vector<128x128xf32>
      %44 = tpu.matmul %42, %43, %cst_30 {dimension_numbers = #tpu.dot_dimension_numbers<[1], [0], [0], [1], [0, 0, 1, 1], [], []>} : vector<128x8xf32>, vector<8x128xf32>, vector<128x128xf32> -> vector<128x128xf32>
      %cst_31 = arith.constant 0.000000e+00 : f32
      %45 = vector.broadcast %cst_31 : f32 to vector<128x128xf32>
      %46 = arith.maximumf %44, %45 : vector<128x128xf32>
      %47 = math.sqrt %46 : vector<128x128xf32>
      %48 = tpu.iota {dimensions = array<i32: 1>} : vector<128x128xi32>
      %49 = tpu.iota {dimensions = array<i32: 0>} : vector<128x128xi32>
      %50 = vector.broadcast %41 : i32 to vector<128x128xi32>
      %51 = arith.cmpi slt, %48, %50 : vector<128x128xi32>
      %cst_32 = arith.constant 1.000000e+30 : f32
      %52 = vector.broadcast %cst_32 : f32 to vector<128x128xf32>
      %53 = arith.select %51, %47, %52 : vector<128x128xi1>, vector<128x128xf32>
      %cst_33 = arith.constant dense<0x7F800000> : vector<128xf32>
      %54 = vector.multi_reduction <minimumf>, %53, %cst_33 [1] : vector<128x128xf32> to vector<128xf32>
      %55 = vector.shape_cast %54 : vector<128xf32> to vector<128x1xf32>
      %56 = tpu.iota {dimensions = array<i32: 0>} : vector<128x1xi32>
      %57 = vector.broadcast %40 : i32 to vector<128x1xi32>
      %58 = arith.cmpi slt, %56, %57 : vector<128x1xi32>
      %cst_34 = arith.constant 0.000000e+00 : f32
      %59 = vector.broadcast %cst_34 : f32 to vector<128x1xf32>
      %60 = arith.select %58, %55, %59 : vector<128x1xi1>, vector<128x1xf32>
      %61 = vector.shape_cast %60 : vector<128x1xf32> to vector<1x128x1xf32>
      %cst_35 = arith.constant dense<0.000000e+00> : vector<1xf32>
      %62 = vector.multi_reduction <add>, %61, %cst_35 [1, 2] : vector<1x128x1xf32> to vector<1xf32>
      %63 = vector.shape_cast %62 : vector<1xf32> to vector<1x1x1xf32>
      %64 = vector.extract %63[0, 0, 0] : f32 from vector<1x1x1xf32>
      %65 = arith.sitofp %40 : i32 to f32
      %cst_36 = arith.constant 1.000000e+00 : f32
      %66 = arith.maximumf %65, %cst_36 : f32
      %67 = arith.divf %64, %66 : f32
      %68 = vector.broadcast %40 : i32 to vector<128x128xi32>
      %69 = arith.cmpi slt, %49, %68 : vector<128x128xi32>
      %cst_37 = arith.constant 1.000000e+30 : f32
      %70 = vector.broadcast %cst_37 : f32 to vector<128x128xf32>
      %71 = arith.select %69, %47, %70 : vector<128x128xi1>, vector<128x128xf32>
      %cst_38 = arith.constant dense<0x7F800000> : vector<128xf32>
      %72 = vector.multi_reduction <minimumf>, %71, %cst_38 [0] : vector<128x128xf32> to vector<128xf32>
      %73 = vector.shape_cast %72 : vector<128xf32> to vector<1x128xf32>
      %74 = tpu.iota {dimensions = array<i32: 1>} : vector<1x128xi32>
      %75 = vector.broadcast %41 : i32 to vector<1x128xi32>
      %76 = arith.cmpi slt, %74, %75 : vector<1x128xi32>
      %cst_39 = arith.constant 0.000000e+00 : f32
      %77 = vector.broadcast %cst_39 : f32 to vector<1x128xf32>
      %78 = arith.select %76, %73, %77 : vector<1x128xi1>, vector<1x128xf32>
      %79 = vector.shape_cast %78 : vector<1x128xf32> to vector<1x1x128xf32>
      %cst_40 = arith.constant dense<0.000000e+00> : vector<1xf32>
      %80 = vector.multi_reduction <add>, %79, %cst_40 [1, 2] : vector<1x1x128xf32> to vector<1xf32>
      %81 = vector.shape_cast %80 : vector<1xf32> to vector<1x1x1xf32>
      %82 = vector.extract %81[0, 0, 0] : f32 from vector<1x1x1xf32>
      %83 = arith.sitofp %41 : i32 to f32
      %cst_41 = arith.constant 1.000000e+00 : f32
      %84 = arith.maximumf %83, %cst_41 : f32
      %85 = arith.divf %82, %84 : f32
      %86 = arith.addf %67, %85 : f32
      %c0_i32_42 = arith.constant 0 : i32
      %87 = arith.cmpi eq, %41, %c0_i32_42 : i32
      %88 = arith.sitofp %40 : i32 to f32
      %c0_i32_43 = arith.constant 0 : i32
      %89 = arith.cmpi eq, %40, %c0_i32_43 : i32
      %90 = arith.sitofp %41 : i32 to f32
      %91 = arith.select %89, %90, %86 : f32
      %92 = arith.select %87, %88, %91 : f32
      %cst_44 = arith.constant 0.899999976 : f32
      %93 = arith.mulf %cst_44, %39 : f32
      %cst_45 = arith.constant 1.000000e-01 : f32
      %94 = arith.mulf %cst_45, %92 : f32
      %95 = arith.addf %93, %94 : f32
      %96 = vector.broadcast %95 : f32 to vector<1x1xf32>
      %c0_46 = arith.constant 0 : index
      %c0_47 = arith.constant 0 : index
      %97 = vector.load %arg6[%c0_46, %c0_47] : memref<1x1xf32, #tpu.memory_space<vmem>>, vector<1x1xf32>
      tpu.vector_store %arg6[%c0_46, %c0_47], %96 {strides = array<i32>} : memref<1x1xf32, #tpu.memory_space<vmem>>, vector<1x1xf32>,
    } else {
    }
    return
  }
  func.func @transform_0(%arg0: i32, %arg1: memref<2xi32, #tpu.memory_space<smem>>) -> (i32, i32) {
    %c0_i32 = arith.constant 0 : i32
    %c0_i32_0 = arith.constant 0 : i32
    return %arg0, %c0_i32 : i32, i32
  }
  func.func @transform_1(%arg0: i32, %arg1: memref<2xi32, #tpu.memory_space<smem>>) -> (i32, i32) {
    %c0_i32 = arith.constant 0 : i32
    %c0_i32_0 = arith.constant 0 : i32
    return %arg0, %c0_i32 : i32, i32
  }
  func.func @transform_2(%arg0: i32, %arg1: memref<2xi32, #tpu.memory_space<smem>>) -> (i32, i32) {
    %c0_i32 = arith.constant 0 : i32
    %c0_i32_0 = arith.constant 0 : i32
    %c0_i32_1 = arith.constant 0 : i32
    return %c0_i32, %c0_i32_0 : i32, i32
  }
  func.func @transform_3(%arg0: i32, %arg1: memref<2xi32, #tpu.memory_space<smem>>) -> (i32, i32) {
    %c0_i32 = arith.constant 0 : i32
    %c0_i32_0 = arith.constant 0 : i32
    %c0_i32_1 = arith.constant 0 : i32
    return %c0_i32, %c0_i32_0 : i32, i32
  }
  func.func @transform_4(%arg0: i32, %arg1: memref<2xi32, #tpu.memory_space<smem>>) -> (i32, i32) {
    %c0_i32 = arith.constant 0 : i32
    %c0_i32_0 = arith.constant 0 : i32
    %c0_i32_1 = arith.constant 0 : i32
    return %c0_i32, %c0_i32_0 : i32, i32
  }
}

</mosaic_0001>

<llo_original>
// kernel: distance_count_loss.1
$region0: #{distance_count_loss.1}
  #allocation0 [shape = 'u32[]', space=smem, size = 0x4, offset = 0x4, fixed_abs, tag = 'smem constant byte address 0x4 - core index']
  #allocation1 [shape = 'u32[144,128]{1,0:T(1,128)}', space=vmem, size = 0x12000, scoped, tag = 'internal scratch']
  #allocation2 [shape = 'f32[1,128]{1,0:T(1,128)}', space=vmem, size = 0x200, scoped, tag = 'scratch operand']
  #allocation3 [shape = 'f32[1,128]{1,0:T(1,128)}', space=vmem, size = 0x200, scoped, tag = 'scratch operand']
  #allocation4 [shape = 's32[1]{0}', space=sflag, size = 0x4, scoped, tag = 'scoped memory for distance_count_loss.1']
  #allocation5 [shape = 'u8[512]{0}', space=smem, size = 0x200, scoped, tag = 'prefetched SMEM operand 0']
  %s0 = inlined_call_operand.vmem [shape: s32[2], index: 0, kind: input, shape index: {}]
  %s1 = inlined_call_operand.vmem [shape: f32[16,128], index: 1, kind: input, shape index: {}]
  %s2 = inlined_call_operand.vmem [shape: f32[16,128], index: 2, kind: input, shape index: {}]
  %s3 = inlined_call_operand.vmem [shape: f32[128,8], index: 3, kind: input, shape index: {}]
  %s4 = inlined_call_operand.vmem [shape: f32[8,128], index: 4, kind: input, shape index: {}]
  %s5 = inlined_call_operand.hbm [shape: f32[1,1], index: 5, kind: output, shape index: {}]
  %s6 = sld [smem:[#allocation0]]
  $region34: #{distance_count_loss.1} parent=0
    _
  %s8 = ssub.s32 1, %s6
  %s9 = scalar_select 0, %s8, %s6
  %s10 = sshll.u32 %s0, 4
  %s11 = int_to_ptr.vmem [resolvable:$true] %s10
  %13 = dma.vmem_to_smem %s11, 16, [#allocation5], [#allocation4]
  %14 = dma.done [#allocation4], 16
  %15 = sfence
  $region1: #{distance_count_loss.1} parent=0
    #allocation6 [shape = 'u8[512]{0}', space=vmem, size = 0x400, scoped, tag = 'output window, operand 0, single buffered']
    #allocation7 [shape = 's32[1]{0}', space=sflag, size = 0x4, scoped, tag = 'scoped memory for distance_count_loss.1']
    %16 = vsyncpa [#allocation7], 0
    // Predicated region
    $region2: #{distance_count_loss.1} parent=1 // pred_check
      _
    $region3: #{distance_count_loss.1} parent=1 // pred_check_branch
      %18 = sbr.rel (0) target = $region5
    $region4: #{distance_count_loss.1} parent=1 // pred_region
      _
    $region5: #{distance_count_loss.1} parent=1 // pred_fallthru
      _
    // Predicated region
    $region6: #{distance_count_loss.1} parent=1 // pred_check
      _
    $region7: #{distance_count_loss.1} parent=1 // pred_check_branch
      %20 = sbr.rel (0) target = $region9
    $region8: #{distance_count_loss.1} parent=1 // pred_region
      _
    $region9: #{distance_count_loss.1} parent=1 // pred_fallthru
      _
    // Predicated region
    $region10: #{distance_count_loss.1} parent=1 // pred_check
      _
    $region11: #{distance_count_loss.1} parent=1 // pred_check_branch
      %22 = sbr.rel (0) target = $region13
    $region12: #{distance_count_loss.1} parent=1 // pred_region
      _
    $region13: #{distance_count_loss.1} parent=1 // pred_fallthru
      _
    // Predicated region
    $region14: #{distance_count_loss.1} parent=1 // pred_check
      _
    $region15: #{distance_count_loss.1} parent=1 // pred_check_branch
      %24 = sbr.rel (0) target = $region17
    $region16: #{distance_count_loss.1} parent=1 // pred_region
      _
    $region17: #{distance_count_loss.1} parent=1 // pred_fallthru
      _
    %p25 = scmp.eq.s32.totalorder 0, 0
    // Predicated region
    $region18: #{distance_count_loss.1} parent=1 // pred_check
      %p26 = pneg %p25
    $region19: #{distance_count_loss.1} parent=1 // pred_check_branch
      %28 = sbr.rel (%p26) target = $region21
    $region20: #{distance_count_loss.1} parent=1 // pred_region
      %29 = vst [vmem:[#allocation2] sm:$0x1] 0.0
      %30 = vst [vmem:[#allocation3] sm:$0x1] 0.0
    $region21: #{distance_count_loss.1} parent=1 // pred_fallthru
      _
    %v31 = vld [vmem:[%s1] sm:$0xff]
    %v32 = vld [vmem:[%s1 + $0x8] sm:$0xff]
    %v33 = vxor.u32 %v31, 2147483648
    %v34 = vxor.u32 %v32, 2147483648
    %v35 = vmul.f32 %v33, 1.442695
    %v36 = vpow.pop %v35
    %v37 = vmul.f32 %v34, 1.442695
    %v38 = vpow.pop %v37
    %v39 = vadd.f32 %v36, 1.0
    %v40 = vadd.f32 %v38, 1.0
    %v41 = vrcp.pop %v39
    %v42 = vmul.f32 1.0, %v41
    %v43 = vrcp.pop %v40
    %v44 = vmul.f32 1.0, %v43
    %v45 = vld [vmem:[%s2] sm:$0xff]
    %v46 = vld [vmem:[%s2 + $0x8] sm:$0xff]
    %v47 = vld [vmem:[#allocation2] sm:$0x1]
    %v48 = vadd.f32 %v42, %v45
    %v49 = vadd.f32 %v44, %v46
    %v50 = vadd.f32 %v48, %v49
    %v51 = vrot.slane %v50, 4
    %v52 = vadd.f32 %v50, %v51
    %v53 = vrot.slane %v52, 2
    %v54 = vadd.f32 %v52, %v53
    %v55 = vrot.slane %v54, 1
    %v56 = vadd.f32 %v54, %v55
    %v57 = vadd.f32 %v47, %v56
    %58 = vst [vmem:[#allocation2] sm:$0x1] %v57
    %v59 = vld [vmem:[#allocation3] sm:$0x1]
    %v60 = vmul.f32 %v42, %v45
    %v61 = vmul.f32 %v44, %v46
    %v62 = vadd.f32 %v60, %v61
    %v63 = vrot.slane %v62, 4
    %v64 = vadd.f32 %v62, %v63
    %v65 = vrot.slane %v64, 2
    %v66 = vadd.f32 %v64, %v65
    %v67 = vrot.slane %v66, 1
    %v68 = vadd.f32 %v66, %v67
    %v69 = vadd.f32 %v59, %v68
    %70 = vst [vmem:[#allocation3] sm:$0x1] %v69
    // Predicated region
    $region22: #{distance_count_loss.1} parent=1 // pred_check
      %p71 = pneg %p25
    $region23: #{distance_count_loss.1} parent=1 // pred_check_branch
      %73 = sbr.rel (%p71) target = $region25
    $region24: #{distance_count_loss.1} parent=1 // pred_region
      %v74 = vld [vmem:[#allocation3] sm:$0x1]
      %vm75 = vcmask 1040384
      %v76 = vsel %vm75, %v74, 0.0
      %77 = vadd.xlane.f32.xlu0 %v76
      %v78 = vpop.xlane.xlu0 %77
      %v79 = vrot.slane %v78, 4
      %v80 = vadd.f32 %v78, %v79
      %v81 = vrot.slane %v80, 2
      %v82 = vadd.f32 %v80, %v81
      %v83 = vrot.slane %v82, 1
      %v84 = vadd.f32 %v82, %v83
      %s85 = vtos %v84
      %v86 = vld [vmem:[#allocation2] sm:$0x1]
      %v87 = vsel %vm75, %v86, 0.0
      %88 = vadd.xlane.f32.xlu0 %v87
      %v89 = vpop.xlane.xlu0 %88
      %v90 = vrot.slane %v89, 4
      %v91 = vadd.f32 %v89, %v90
      %v92 = vrot.slane %v91, 2
      %v93 = vadd.f32 %v91, %v92
      %v94 = vrot.slane %v93, 1
      %v95 = vadd.f32 %v93, %v94
      %s96 = vtos %v95
      %s97 = ssub.f32 %s96, %s85
      %s98 = sadd.f32 %s85, 1e-10
      %s99 = sadd.f32 %s97, 1e-10
      %v100 = vstv %s99
      %v101 = vrcp.pop %v100
      %s102 = vtos %v101
      %s103 = smul.f32 %s98, %s102
      %s104 = ssub.f32 1.0, %s103
      %s105 = sld [smem:[#allocation5]]
      %s106 = sld [smem:[#allocation5 + $0x1]]
      %v107 = vld [vmem:[%s3] sm:$0xff]
      %v108 = vld [vmem:[%s3 + $0x8] sm:$0xff]
      %v109 = vld [vmem:[%s3 + $0x10] sm:$0xff]
      %v110 = vld [vmem:[%s3 + $0x18] sm:$0xff]
      %v111 = vld [vmem:[%s3 + $0x20] sm:$0xff]
      %v112 = vld [vmem:[%s3 + $0x28] sm:$0xff]
      %v113 = vld [vmem:[%s3 + $0x30] sm:$0xff]
      %v114 = vld [vmem:[%s3 + $0x38] sm:$0xff]
      %v115 = vld [vmem:[%s3 + $0x40] sm:$0xff]
      %v116 = vld [vmem:[%s3 + $0x48] sm:$0xff]
      %v117 = vld [vmem:[%s3 + $0x50] sm:$0xff]
      %v118 = vld [vmem:[%s3 + $0x58] sm:$0xff]
      %v119 = vld [vmem:[%s3 + $0x60] sm:$0xff]
      %v120 = vld [vmem:[%s3 + $0x68] sm:$0xff]
      %v121 = vld [vmem:[%s3 + $0x70] sm:$0xff]
      %v122 = vld [vmem:[%s3 + $0x78] sm:$0xff]
      %v123 = vld [vmem:[%s4] sm:$0xff]
      %vm124 = vcmask 64512
      %v126 = vsel %vm124, %v107, 0
      %v129 = vsel %vm124, %v108, 0
      %v132 = vsel %vm124, %v109, 0
      %v135 = vsel %vm124, %v110, 0
      %v138 = vsel %vm124, %v111, 0
      %v141 = vsel %vm124, %v112, 0
      %v144 = vsel %vm124, %v113, 0
      %v147 = vsel %vm124, %v114, 0
      %v150 = vsel %vm124, %v115, 0
      %v153 = vsel %vm124, %v116, 0
      %v156 = vsel %vm124, %v117, 0
      %v159 = vsel %vm124, %v118, 0
      %v162 = vsel %vm124, %v119, 0
      %v165 = vsel %vm124, %v120, 0
      %v168 = vsel %vm124, %v121, 0
      %v171 = vsel %vm124, %v122, 0
      %173 = vmatprep.subr.mxu0 0.0
      %174 = vmatpush1.msra.mxu0 %v123
      %175 = vmatprep.subr.mxu0 0.0
      %176 = vmatpush1.msra.mxu0 0.0
      %177 = vmatprep.subr.mxu0 0.0
      %178 = vmatpush1.msra.mxu0 0.0
      %179 = vmatprep.subr.mxu0 0.0
      %180 = vmatpush1.msra.mxu0 0.0
      %181 = vmatprep.subr.mxu0 0.0
      %182 = vmatpush1.msra.mxu0 0.0
      %183 = vmatprep.subr.mxu0 0.0
      %184 = vmatpush1.msra.mxu0 0.0
      %185 = vmatprep.subr.mxu0 0.0
      %186 = vmatpush1.msra.mxu0 0.0
      %187 = vmatprep.subr.mxu0 0.0
      %188 = vmatpush1.msra.mxu0 0.0
      %189 = vmatprep.subr.mxu0 0.0
      %190 = vmatpush1.msra.mxu0 0.0
      %191 = vmatprep.subr.mxu0 0.0
      %192 = vmatpush1.msra.mxu0 0.0
      %193 = vmatprep.subr.mxu0 0.0
      %194 = vmatpush1.msra.mxu0 0.0
      %195 = vmatprep.subr.mxu0 0.0
      %196 = vmatpush1.msra.mxu0 0.0
      %197 = vmatprep.subr.mxu0 0.0
      %198 = vmatpush1.msra.mxu0 0.0
      %199 = vmatprep.subr.mxu0 0.0
      %200 = vmatpush1.msra.mxu0 0.0
      %201 = vmatprep.subr.mxu0 0.0
      %202 = vmatpush1.msra.mxu0 0.0
      %203 = vmatprep.subr.mxu0 0.0
      %204 = vmatpush1.msra.mxu0 0.0
      %205 = vmatprep.subr.mxu0 0.0
      %206 = vmatpush1.msra.mxu0 0.0
      %207 = vmatprep.subr.mxu0 0.0
      %208 = vmatpush1.msra.mxu0 0.0
      %209 = vmatprep.subr.mxu0 0.0
      %210 = vmatpush1.msra.mxu0 0.0
      %211 = vmatprep.subr.mxu0 0.0
      %212 = vmatpush1.msra.mxu0 0.0
      %213 = vmatprep.subr.mxu0 0.0
      %214 = vmatpush1.msra.mxu0 0.0
      %215 = vmatprep.subr.mxu0 0.0
      %216 = vmatpush1.msra.mxu0 0.0
      %217 = vmatprep.subr.mxu0 0.0
      %218 = vmatpush1.msra.mxu0 0.0
      %219 = vmatprep.subr.mxu0 0.0
      %220 = vmatpush1.msra.mxu0 0.0
      %221 = vmatprep.subr.mxu0 0.0
      %222 = vmatpush1.msra.mxu0 0.0
      %223 = vmatprep.subr.mxu0 0.0
      %224 = vmatpush1.msra.mxu0 0.0
      %225 = vmatprep.subr.mxu0 0.0
      %226 = vmatpush1.msra.mxu0 0.0
      %227 = vmatprep.subr.mxu0 0.0
      %228 = vmatpush1.msra.mxu0 0.0
      %229 = vmatprep.subr.mxu0 0.0
      %230 = vmatpush1.msra.mxu0 0.0
      %231 = vmatprep.subr.mxu0 0.0
      %232 = vmatpush1.msra.mxu0 0.0
      %233 = vmatprep.subr.mxu0 0.0
      %234 = vmatpush1.msra.mxu0 0.0
      %235 = vmatprep.subr.mxu0 0.0
      %236 = vmatpush1.msra.mxu0 0.0
      %237 = vmatprep.mubr.f32.mxu0 0.0
      %238 = vmatmul.mubr.f32.gmra.mrb[0].mxu0 %v126
      %v239 = vpop.f32.mrb[0].mxu0
      %v240 = vadd.f32 0.0, %v239
      %v241 = vpop.f32.mrb[0].mxu0
      %242 = vmatprep.mubr.f32.mxu0 0.0
      %243 = vmatmul.mubr.f32.gmra.mrb[0].mxu0 %v129
      %v244 = vpop.f32.mrb[0].mxu0
      %v245 = vadd.f32 0.0, %v244
      %v246 = vpop.f32.mrb[0].mxu0
      %247 = vmatprep.mubr.f32.mxu0 0.0
      %248 = vmatmul.mubr.f32.gmra.mrb[0].mxu0 %v132
      %v249 = vpop.f32.mrb[0].mxu0
      %v250 = vadd.f32 0.0, %v249
      %v251 = vpop.f32.mrb[0].mxu0
      %252 = vmatprep.mubr.f32.mxu0 0.0
      %253 = vmatmul.mubr.f32.gmra.mrb[0].mxu0 %v135
      %v254 = vpop.f32.mrb[0].mxu0
      %v255 = vadd.f32 0.0, %v254
      %v256 = vpop.f32.mrb[0].mxu0
      %257 = vmatprep.mubr.f32.mxu0 0.0
      %258 = vmatmul.mubr.f32.gmra.mrb[0].mxu0 %v138
      %v259 = vpop.f32.mrb[0].mxu0
      %v260 = vadd.f32 0.0, %v259
      %v261 = vpop.f32.mrb[0].mxu0
      %262 = vmatprep.mubr.f32.mxu0 0.0
      %263 = vmatmul.mubr.f32.gmra.mrb[0].mxu0 %v141
      %v264 = vpop.f32.mrb[0].mxu0
      %v265 = vadd.f32 0.0, %v264
      %v266 = vpop.f32.mrb[0].mxu0
      %267 = vmatprep.mubr.f32.mxu0 0.0
      %268 = vmatmul.mubr.f32.gmra.mrb[0].mxu0 %v144
      %v269 = vpop.f32.mrb[0].mxu0
      %v270 = vadd.f32 0.0, %v269
      %v271 = vpop.f32.mrb[0].mxu0
      %272 = vmatprep.mubr.f32.mxu0 0.0
      %273 = vmatmul.mubr.f32.gmra.mrb[0].mxu0 %v147
      %v274 = vpop.f32.mrb[0].mxu0
      %v275 = vadd.f32 0.0, %v274
      %v276 = vpop.f32.mrb[0].mxu0
      %277 = vmatprep.mubr.f32.mxu0 0.0
      %278 = vmatmul.mubr.f32.gmra.mrb[0].mxu0 %v150
      %v279 = vpop.f32.mrb[0].mxu0
      %v280 = vadd.f32 0.0, %v279
      %v281 = vpop.f32.mrb[0].mxu0
      %282 = vmatprep.mubr.f32.mxu0 0.0
      %283 = vmatmul.mubr.f32.gmra.mrb[0].mxu0 %v153
      %v284 = vpop.f32.mrb[0].mxu0
      %v285 = vadd.f32 0.0, %v284
      %v286 = vpop.f32.mrb[0].mxu0
      %287 = vmatprep.mubr.f32.mxu0 0.0
      %288 = vmatmul.mubr.f32.gmra.mrb[0].mxu0 %v156
      %v289 = vpop.f32.mrb[0].mxu0
      %v290 = vadd.f32 0.0, %v289
      %v291 = vpop.f32.mrb[0].mxu0
      %292 = vmatprep.mubr.f32.mxu0 0.0
      %293 = vmatmul.mubr.f32.gmra.mrb[0].mxu0 %v159
      %v294 = vpop.f32.mrb[0].mxu0
      %v295 = vadd.f32 0.0, %v294
      %v296 = vpop.f32.mrb[0].mxu0
      %297 = vmatprep.mubr.f32.mxu0 0.0
      %298 = vmatmul.mubr.f32.gmra.mrb[0].mxu0 %v162
      %v299 = vpop.f32.mrb[0].mxu0
      %v300 = vadd.f32 0.0, %v299
      %v301 = vpop.f32.mrb[0].mxu0
      %302 = vmatprep.mubr.f32.mxu0 0.0
      %303 = vmatmul.mubr.f32.gmra.mrb[0].mxu0 %v165
      %v304 = vpop.f32.mrb[0].mxu0
      %v305 = vadd.f32 0.0, %v304
      %v306 = vpop.f32.mrb[0].mxu0
      %307 = vmatprep.mubr.f32.mxu0 0.0
      %308 = vmatmul.mubr.f32.gmra.mrb[0].mxu0 %v168
      %v309 = vpop.f32.mrb[0].mxu0
      %v310 = vadd.f32 0.0, %v309
      %v311 = vpop.f32.mrb[0].mxu0
      %312 = vmatprep.mubr.f32.mxu0 0.0
      %313 = vmatmul.mubr.f32.gmra.mrb[0].mxu0 %v171
      %v314 = vpop.f32.mrb[0].mxu0
      %v315 = vadd.f32 0.0, %v314
      %v316 = vpop.f32.mrb[0].mxu0
      %317 = vdwg.mxu0
      %v318 = vmax.f32 %v240, 0.0
      %v319 = vmax.f32 %v245, 0.0
      %v320 = vmax.f32 %v250, 0.0
      %v321 = vmax.f32 %v255, 0.0
      %v322 = vmax.f32 %v260, 0.0
      %v323 = vmax.f32 %v265, 0.0
      %v324 = vmax.f32 %v270, 0.0
      %v325 = vmax.f32 %v275, 0.0
      %v326 = vmax.f32 %v280, 0.0
      %v327 = vmax.f32 %v285, 0.0
      %v328 = vmax.f32 %v290, 0.0
      %v329 = vmax.f32 %v295, 0.0
      %v330 = vmax.f32 %v300, 0.0
      %v331 = vmax.f32 %v305, 0.0
      %v332 = vmax.f32 %v310, 0.0
      %v333 = vmax.f32 %v315, 0.0
      %v334 = vrsqrt.pop %v318
      %v335 = vmul.f32 %v318, %v334
      %vm336 = vcmp.eq.f32.partialorder %v318, inf
      %v337 = vsel %vm336, %v318, %v335
      %vm338 = vcmp.eq.f32.partialorder %v318, 0.0
      %v339 = vand.u32 %v318, 2147483648
      %v340 = vsel %vm338, %v339, %v337
      %v341 = vrsqrt.pop %v319
      %v342 = vmul.f32 %v319, %v341
      %vm343 = vcmp.eq.f32.partialorder %v319, inf
      %v344 = vsel %vm343, %v319, %v342
      %vm345 = vcmp.eq.f32.partialorder %v319, 0.0
      %v346 = vand.u32 %v319, 2147483648
      %v347 = vsel %vm345, %v346, %v344
      %v348 = vrsqrt.pop %v320
      %v349 = vmul.f32 %v320, %v348
      %vm350 = vcmp.eq.f32.partialorder %v320, inf
      %v351 = vsel %vm350, %v320, %v349
      %vm352 = vcmp.eq.f32.partialorder %v320, 0.0
      %v353 = vand.u32 %v320, 2147483648
      %v354 = vsel %vm352, %v353, %v351
      %v355 = vrsqrt.pop %v321
      %v356 = vmul.f32 %v321, %v355
      %vm357 = vcmp.eq.f32.partialorder %v321, inf
      %v358 = vsel %vm357, %v321, %v356
      %vm359 = vcmp.eq.f32.partialorder %v321, 0.0
      %v360 = vand.u32 %v321, 2147483648
      %v361 = vsel %vm359, %v360, %v358
      %v362 = vrsqrt.pop %v322
      %v363 = vmul.f32 %v322, %v362
      %vm364 = vcmp.eq.f32.partialorder %v322, inf
      %v365 = vsel %vm364, %v322, %v363
      %vm366 = vcmp.eq.f32.partialorder %v322, 0.0
      %v367 = vand.u32 %v322, 2147483648
      %v368 = vsel %vm366, %v367, %v365
      %v369 = vrsqrt.pop %v323
      %v370 = vmul.f32 %v323, %v369
      %vm371 = vcmp.eq.f32.partialorder %v323, inf
      %v372 = vsel %vm371, %v323, %v370
      %vm373 = vcmp.eq.f32.partialorder %v323, 0.0
      %v374 = vand.u32 %v323, 2147483648
      %v375 = vsel %vm373, %v374, %v372
      %v376 = vrsqrt.pop %v324
      %v377 = vmul.f32 %v324, %v376
      %vm378 = vcmp.eq.f32.partialorder %v324, inf
      %v379 = vsel %vm378, %v324, %v377
      %vm380 = vcmp.eq.f32.partialorder %v324, 0.0
      %v381 = vand.u32 %v324, 2147483648
      %v382 = vsel %vm380, %v381, %v379
      %v383 = vrsqrt.pop %v325
      %v384 = vmul.f32 %v325, %v383
      %vm385 = vcmp.eq.f32.partialorder %v325, inf
      %v386 = vsel %vm385, %v325, %v384
      %vm387 = vcmp.eq.f32.partialorder %v325, 0.0
      %v388 = vand.u32 %v325, 2147483648
      %v389 = vsel %vm387, %v388, %v386
      %v390 = vrsqrt.pop %v326
      %v391 = vmul.f32 %v326, %v390
      %vm392 = vcmp.eq.f32.partialorder %v326, inf
      %v393 = vsel %vm392, %v326, %v391
      %vm394 = vcmp.eq.f32.partialorder %v326, 0.0
      %v395 = vand.u32 %v326, 2147483648
      %v396 = vsel %vm394, %v395, %v393
      %v397 = vrsqrt.pop %v327
      %v398 = vmul.f32 %v327, %v397
      %vm399 = vcmp.eq.f32.partialorder %v327, inf
      %v400 = vsel %vm399, %v327, %v398
      %vm401 = vcmp.eq.f32.partialorder %v327, 0.0
      %v402 = vand.u32 %v327, 2147483648
      %v403 = vsel %vm401, %v402, %v400
      %v404 = vrsqrt.pop %v328
      %v405 = vmul.f32 %v328, %v404
      %vm406 = vcmp.eq.f32.partialorder %v328, inf
      %v407 = vsel %vm406, %v328, %v405
      %vm408 = vcmp.eq.f32.partialorder %v328, 0.0
      %v409 = vand.u32 %v328, 2147483648
      %v410 = vsel %vm408, %v409, %v407
      %v411 = vrsqrt.pop %v329
      %v412 = vmul.f32 %v329, %v411
      %vm413 = vcmp.eq.f32.partialorder %v329, inf
      %v414 = vsel %vm413, %v329, %v412
      %vm415 = vcmp.eq.f32.partialorder %v329, 0.0
      %v416 = vand.u32 %v329, 2147483648
      %v417 = vsel %vm415, %v416, %v414
      %v418 = vrsqrt.pop %v330
      %v419 = vmul.f32 %v330, %v418
      %vm420 = vcmp.eq.f32.partialorder %v330, inf
      %v421 = vsel %vm420, %v330, %v419
      %vm422 = vcmp.eq.f32.partialorder %v330, 0.0
      %v423 = vand.u32 %v330, 2147483648
      %v424 = vsel %vm422, %v423, %v421
      %v425 = vrsqrt.pop %v331
      %v426 = vmul.f32 %v331, %v425
      %vm427 = vcmp.eq.f32.partialorder %v331, inf
      %v428 = vsel %vm427, %v331, %v426
      %vm429 = vcmp.eq.f32.partialorder %v331, 0.0
      %v430 = vand.u32 %v331, 2147483648
      %v431 = vsel %vm429, %v430, %v428
      %v432 = vrsqrt.pop %v332
      %v433 = vmul.f32 %v332, %v432
      %vm434 = vcmp.eq.f32.partialorder %v332, inf
      %v435 = vsel %vm434, %v332, %v433
      %vm436 = vcmp.eq.f32.partialorder %v332, 0.0
      %v437 = vand.u32 %v332, 2147483648
      %v438 = vsel %vm436, %v437, %v435
      %v439 = vrsqrt.pop %v333
      %v440 = vmul.f32 %v333, %v439
      %vm441 = vcmp.eq.f32.partialorder %v333, inf
      %v442 = vsel %vm441, %v333, %v440
      %vm443 = vcmp.eq.f32.partialorder %v333, 0.0
      %v444 = vand.u32 %v333, 2147483648
      %v445 = vsel %vm443, %v444, %v442
      %v446 = vlaneseq
      %v447 = vand.u32 %v446, 127
      %v448 = vlaneseq
      %v449 = vshrl.u32 %v448, 7
      %v450 = vadd.s32 %v449, 8
      %v451 = vadd.s32 %v449, 16
      %v452 = vadd.s32 %v449, 24
      %v453 = vadd.s32 %v449, 32
      %v454 = vadd.s32 %v449, 40
      %v455 = vadd.s32 %v449, 48
      %v456 = vadd.s32 %v449, 56
      %v457 = vadd.s32 %v449, 64
      %v458 = vadd.s32 %v449, 72
      %v459 = vadd.s32 %v449, 80
      %v460 = vadd.s32 %v449, 88
      %v461 = vadd.s32 %v449, 96
      %v462 = vadd.s32 %v449, 104
      %v463 = vadd.s32 %v449, 112
      %v464 = vadd.s32 %v449, 120
      %v465 = vstv %s106
      %vm466 = vcmp.lt.s32.totalorder %v447, %v465
      %v467 = vsel %vm466, %v340, 1e+30
      %v468 = vsel %vm466, %v347, 1e+30
      %v469 = vsel %vm466, %v354, 1e+30
      %v470 = vsel %vm466, %v361, 1e+30
      %v471 = vsel %vm466, %v368, 1e+30
      %v472 = vsel %vm466, %v375, 1e+30
      %v473 = vsel %vm466, %v382, 1e+30
      %v474 = vsel %vm466, %v389, 1e+30
      %v475 = vsel %vm466, %v396, 1e+30
      %v476 = vsel %vm466, %v403, 1e+30
      %v477 = vsel %vm466, %v410, 1e+30
      %v478 = vsel %vm466, %v417, 1e+30
      %v479 = vsel %vm466, %v424, 1e+30
      %v480 = vsel %vm466, %v431, 1e+30
      %v481 = vsel %vm466, %v438, 1e+30
      %v482 = vsel %vm466, %v445, 1e+30
      %483 = vmin.xlane.f32.xlu0 %v467
      %v484 = vpop.xlane.xlu0 %483
      %485 = vmin.xlane.f32.xlu0 %v468
      %v486 = vpop.xlane.xlu0 %485
      %487 = vmin.xlane.f32.xlu0 %v469
      %v488 = vpop.xlane.xlu0 %487
      %489 = vmin.xlane.f32.xlu0 %v470
      %v490 = vpop.xlane.xlu0 %489
      %491 = vmin.xlane.f32.xlu0 %v471
      %v492 = vpop.xlane.xlu0 %491
      %493 = vmin.xlane.f32.xlu0 %v472
      %v494 = vpop.xlane.xlu0 %493
      %495 = vmin.xlane.f32.xlu0 %v473
      %v496 = vpop.xlane.xlu0 %495
      %497 = vmin.xlane.f32.xlu0 %v474
      %v498 = vpop.xlane.xlu0 %497
      %499 = vmin.xlane.f32.xlu0 %v475
      %v500 = vpop.xlane.xlu0 %499
      %501 = vmin.xlane.f32.xlu0 %v476
      %v502 = vpop.xlane.xlu0 %501
      %503 = vmin.xlane.f32.xlu0 %v477
      %v504 = vpop.xlane.xlu0 %503
      %505 = vmin.xlane.f32.xlu0 %v478
      %v506 = vpop.xlane.xlu0 %505
      %507 = vmin.xlane.f32.xlu0 %v479
      %v508 = vpop.xlane.xlu0 %507
      %509 = vmin.xlane.f32.xlu0 %v480
      %v510 = vpop.xlane.xlu0 %509
      %511 = vmin.xlane.f32.xlu0 %v481
      %v512 = vpop.xlane.xlu0 %511
      %513 = vmin.xlane.f32.xlu0 %v482
      %v514 = vpop.xlane.xlu0 %513
      %v515 = vstv %s105
      %vm516 = vcmp.lt.s32.totalorder %v449, %v515
      %vm517 = vcmp.lt.s32.totalorder %v450, %v515
      %vm518 = vcmp.lt.s32.totalorder %v451, %v515
      %vm519 = vcmp.lt.s32.totalorder %v452, %v515
      %vm520 = vcmp.lt.s32.totalorder %v453, %v515
      %vm521 = vcmp.lt.s32.totalorder %v454, %v515
      %vm522 = vcmp.lt.s32.totalorder %v455, %v515
      %vm523 = vcmp.lt.s32.totalorder %v456, %v515
      %vm524 = vcmp.lt.s32.totalorder %v457, %v515
      %vm525 = vcmp.lt.s32.totalorder %v458, %v515
      %vm526 = vcmp.lt.s32.totalorder %v459, %v515
      %vm527 = vcmp.lt.s32.totalorder %v460, %v515
      %vm528 = vcmp.lt.s32.totalorder %v461, %v515
      %vm529 = vcmp.lt.s32.totalorder %v462, %v515
      %vm530 = vcmp.lt.s32.totalorder %v463, %v515
      %vm531 = vcmp.lt.s32.totalorder %v464, %v515
      %v532 = vsel %vm516, %v484, 0.0
      %v533 = vsel %vm517, %v486, 0.0
      %v534 = vsel %vm518, %v488, 0.0
      %v535 = vsel %vm519, %v490, 0.0
      %v536 = vsel %vm520, %v492, 0.0
      %v537 = vsel %vm521, %v494, 0.0
      %v538 = vsel %vm522, %v496, 0.0
      %v539 = vsel %vm523, %v498, 0.0
      %v540 = vsel %vm524, %v500, 0.0
      %v541 = vsel %vm525, %v502, 0.0
      %v542 = vsel %vm526, %v504, 0.0
      %v543 = vsel %vm527, %v506, 0.0
      %v544 = vsel %vm528, %v508, 0.0
      %v545 = vsel %vm529, %v510, 0.0
      %v546 = vsel %vm530, %v512, 0.0
      %v547 = vsel %vm531, %v514, 0.0
      %vm548 = vcmask 7168
      %v549 = vsel %vm548, %v532, 0.0
      %v550 = vsel %vm548, %v533, 0.0
      %v551 = vadd.f32 %v549, %v550
      %v552 = vsel %vm548, %v534, 0.0
      %v553 = vadd.f32 %v551, %v552
      %v554 = vsel %vm548, %v535, 0.0
      %v555 = vadd.f32 %v553, %v554
      %v556 = vsel %vm548, %v536, 0.0
      %v557 = vadd.f32 %v555, %v556
      %v558 = vsel %vm548, %v537, 0.0
      %v559 = vadd.f32 %v557, %v558
      %v560 = vsel %vm548, %v538, 0.0
      %v561 = vadd.f32 %v559, %v560
      %v562 = vsel %vm548, %v539, 0.0
      %v563 = vadd.f32 %v561, %v562
      %v564 = vsel %vm548, %v540, 0.0
      %v565 = vadd.f32 %v563, %v564
      %v566 = vsel %vm548, %v541, 0.0
      %v567 = vadd.f32 %v565, %v566
      %v568 = vsel %vm548, %v542, 0.0
      %v569 = vadd.f32 %v567, %v568
      %v570 = vsel %vm548, %v543, 0.0
      %v571 = vadd.f32 %v569, %v570
      %v572 = vsel %vm548, %v544, 0.0
      %v573 = vadd.f32 %v571, %v572
      %v574 = vsel %vm548, %v545, 0.0
      %v575 = vadd.f32 %v573, %v574
      %v576 = vsel %vm548, %v546, 0.0
      %v577 = vadd.f32 %v575, %v576
      %v578 = vsel %vm548, %v547, 0.0
      %v579 = vadd.f32 %v577, %v578
      %580 = vadd.xlane.f32.xlu0 %v579
      %v581 = vpop.xlane.xlu0 %580
      %v582 = vrot.slane %v581, 4
      %v583 = vadd.f32 %v581, %v582
      %v584 = vrot.slane %v583, 2
      %v585 = vadd.f32 %v583, %v584
      %v586 = vrot.slane %v585, 1
      %v587 = vadd.f32 %v585, %v586
      %s588 = vtos %v587
      %s589 = scvt.s32.f32 %s105
      %s590 = smax.f32 %s589, 1.0
      %v591 = vstv %s590
      %v592 = vrcp.pop %v591
      %s593 = vtos %v592
      %s594 = smul.f32 %s588, %s593
      %v595 = vsel %vm516, %v340, 1e+30
      %v596 = vsel %vm517, %v347, 1e+30
      %v597 = vsel %vm518, %v354, 1e+30
      %v598 = vsel %vm519, %v361, 1e+30
      %v599 = vsel %vm520, %v368, 1e+30
      %v600 = vsel %vm521, %v375, 1e+30
      %v601 = vsel %vm522, %v382, 1e+30
      %v602 = vsel %vm523, %v389, 1e+30
      %v603 = vsel %vm524, %v396, 1e+30
      %v604 = vsel %vm525, %v403, 1e+30
      %v605 = vsel %vm526, %v410, 1e+30
      %v606 = vsel %vm527, %v417, 1e+30
      %v607 = vsel %vm528, %v424, 1e+30
      %v608 = vsel %vm529, %v431, 1e+30
      %v609 = vsel %vm530, %v438, 1e+30
      %v610 = vsel %vm531, %v445, 1e+30
      %v611 = vmin.f32 %v595, %v599
      %v612 = vmin.f32 %v596, %v600
      %v613 = vmin.f32 %v597, %v601
      %v614 = vmin.f32 %v598, %v602
      %v615 = vmin.f32 %v611, %v603
      %v616 = vmin.f32 %v612, %v604
      %v617 = vmin.f32 %v613, %v605
      %v618 = vmin.f32 %v614, %v606
      %v619 = vmin.f32 %v615, %v607
      %v620 = vmin.f32 %v616, %v608
      %v621 = vmin.f32 %v617, %v609
      %v622 = vmin.f32 %v618, %v610
      %v623 = vmin.f32 %v619, %v620
      %v624 = vmin.f32 %v621, %v622
      %v625 = vmin.f32 %v623, %v624
      %v626 = vrot.slane %v625, 4
      %v627 = vmin.f32 %v625, %v626
      %v628 = vrot.slane %v627, 2
      %v629 = vmin.f32 %v627, %v628
      %v630 = vrot.slane %v629, 1
      %v631 = vmin.f32 %v629, %v630
      %v632 = vsel %vm466, %v631, 0.0
      %v633 = vsel %vm75, %v632, 0.0
      %634 = vadd.xlane.f32.xlu0 %v633
      %v635 = vpop.xlane.xlu0 %634
      %v636 = vrot.slane %v635, 4
      %v637 = vadd.f32 %v635, %v636
      %v638 = vrot.slane %v637, 2
      %v639 = vadd.f32 %v637, %v638
      %v640 = vrot.slane %v639, 1
      %v641 = vadd.f32 %v639, %v640
      %s642 = vtos %v641
      %s643 = scvt.s32.f32 %s106
      %s644 = smax.f32 %s643, 1.0
      %v645 = vstv %s644
      %v646 = vrcp.pop %v645
      %s647 = vtos %v646
      %s648 = smul.f32 %s642, %s647
      %s649 = sadd.f32 %s594, %s648
      %p650 = scmp.eq.s32.totalorder %s106, 0
      %p651 = scmp.eq.s32.totalorder %s105, 0
      %s652 = scalar_select %p651, %s643, %s649
      %s653 = scalar_select %p650, %s589, %s652
      %s654 = smul.f32 %s104, 0.9
      %s655 = smul.f32 %s653, 0.1
      %s656 = sadd.f32 %s654, %s655
      %v657 = vstv %s656
      %vm658 = vcmask 0
      %659 = vst.msk [vmem:[#allocation6] sm:$0x1] %vm658, %v657
    $region25: #{distance_count_loss.1} parent=1 // pred_fallthru
      _
    // Predicated region
    $region26: #{distance_count_loss.1} parent=1 // pred_check
      _
    $region27: #{distance_count_loss.1} parent=1 // pred_check_branch
      %661 = sbr.rel (0) target = $region29
    $region28: #{distance_count_loss.1} parent=1 // pred_region
      %s663 = ssub.s32 16, 16
      %664 = vsyncadd [#allocation7], %s663
      %s666 = sshll.u32 [#allocation6], 4
      %s667 = int_to_ptr.vmem [resolvable:$true] %s666
      %669 = dma.vmem_to_hbm [thread:$0]  %s667, 16, %s5, [#allocation7]
    $region29: #{distance_count_loss.1} parent=1 // pred_fallthru
      _
    // Predicated region
    $region30: #{distance_count_loss.1} parent=1 // pred_check
      _
    $region31: #{distance_count_loss.1} parent=1 // pred_check_branch
      %671 = sbr.rel (0) target = $region33
    $region32: #{distance_count_loss.1} parent=1 // pred_region
      %672 = dma.done [#allocation7], 16
    $region33: #{distance_count_loss.1} parent=1 // pred_fallthru
      _
    %673 = vsyncpa [#allocation7], 1

</llo_original>
